<compile_context>
chip_gen: v6e
topology: v6e:2x2x1
jax: 0.10.0
libtpu: 0.0.40
codegen_flags: <defaults>
</compile_context>

<pallas_src>
import jax
import jax.numpy as jnp
from jax.experimental import pallas as pl
from jax.experimental.pallas import tpu as pltpu

GN_EPS = 1e-5


# ------------------------------- helpers ------------------------------------ #
def _round_up(x, m):
    return (x + m - 1) // m * m


def _pick_tile(total, target, mult=8):
    """Largest divisor of `total` that is <= target, preferring multiples of `mult`."""
    divs = [d for d in range(1, total + 1) if total % d == 0]
    good = [d for d in divs if d <= target and d % mult == 0]
    if good:
        return max(good)
    ok = [d for d in divs if d <= target]
    return max(ok) if ok else total


def _vmem_limit(block_bytes):
    """Hardware-derived VMEM limit (v7x: 64 MiB/TC, v5e/v6e: 128 MiB) with headroom."""
    try:
        cap = int(pltpu.get_tpu_info().vmem_capacity_bytes)
    except Exception:
        cap = 64 << 20
    return int(min(int(cap * 0.9), max(block_bytes + (16 << 20), 32 << 20)))


def _group_scale_shift(s1, s2, gamma, beta, count, c_real, num_groups):
    """Fold GroupNorm group stats + affine into per-channel (scale, shift).  All [1, Cp] f32."""
    cp = s1.shape[-1]
    cg = c_real // num_groups
    inv = 1.0 / float(count)
    ch = jax.lax.broadcasted_iota(jnp.int32, (1, cp), 1)
    scale = jnp.zeros((1, cp), jnp.float32)
    shift = jnp.zeros((1, cp), jnp.float32)
    for g in range(num_groups):                           # loops over [1, Cp] stats only
        m = (ch >= g * cg) & (ch < (g + 1) * cg)
        gs1 = jnp.sum(jnp.where(m, s1, 0.0), axis=1, keepdims=True)
        gs2 = jnp.sum(jnp.where(m, s2, 0.0), axis=1, keepdims=True)
        mean = gs1 * inv
        var = jnp.maximum(gs2 * inv - mean * mean, 0.0)   # clamp: single-pass cancellation guard
        a = gamma * jax.lax.rsqrt(var + GN_EPS)
        scale = jnp.where(m, a, scale)
        shift = jnp.where(m, beta - mean * a, shift)
    return scale, shift


# ----------------------------- Pallas kernels ------------------------------- #
def _make_conv1x1_gn_kernel(num_groups, c_real, hw, t_hw, do_relu, res_mode):
    """1x1-conv(matmul) + two-pass GroupNorm (+ residual / fused downsample) (+ ReLU)."""
    n_t = hw // t_hw
    count = hw * (c_real // num_groups)

    def kernel(*refs):
        if res_mode == "conv":
            (p_ref, w_ref, g_ref, b_ref, pd_ref, wd_ref, gd_ref, bd_ref,
             o_ref, acc_ref, s1_ref, s2_ref, accd_ref, s1d_ref, s2d_ref) = refs
        elif res_mode == "data":
            (p_ref, w_ref, g_ref, b_ref, r_ref,
             o_ref, acc_ref, s1_ref, s2_ref) = refs
        else:
            p_ref, w_ref, g_ref, b_ref, o_ref, acc_ref, s1_ref, s2_ref = refs

        t = pl.program_id(1)

        @pl.when(t == 0)
        def _():
            s1_ref[...] = jnp.zeros_like(s1_ref)
            s2_ref[...] = jnp.zeros_like(s2_ref)
            if res_mode == "conv":
                s1d_ref[...] = jnp.zeros_like(s1d_ref)
                s2d_ref[...] = jnp.zeros_like(s2d_ref)

        row0 = pl.multiple_of(t * t_hw, t_hw)

        # bf16 operands on the MXU, f32 accumulation; GN stats from the f32 values.
        y = jnp.dot(p_ref[0], w_ref[...], preferred_element_type=jnp.float32)
        s1_ref[...] += jnp.sum(y, axis=0, keepdims=True)
        s2_ref[...] += jnp.sum(y * y, axis=0, keepdims=True)
        acc_ref[pl.ds(row0, t_hw), :] = y

        if res_mode == "conv":                 # fused downsample-shortcut conv
            yd = jnp.dot(pd_ref[0], wd_ref[...], preferred_element_type=jnp.float32)
            s1d_ref[...] += jnp.sum(yd, axis=0, keepdims=True)
            s2d_ref[...] += jnp.sum(yd * yd, axis=0, keepdims=True)
            accd_ref[pl.ds(row0, t_hw), :] = yd

        @pl.when(t == n_t - 1)                 # finalize: fold stats, apply, single bf16 store
        def _():
            scale, shift = _group_scale_shift(s1_ref[...], s2_ref[...], g_ref[...],
                                              b_ref[...], count, c_real, num_groups)
            out = acc_ref[...] * scale + shift
            if res_mode == "conv":
                scd, shd = _group_scale_shift(s1d_ref[...], s2d_ref[...], gd_ref[...],
                                              bd_ref[...], count, c_real, num_groups)
                out = out + accd_ref[...] * scd + shd
            elif res_mode == "data":
                out = out + r_ref[0].astype(jnp.float32)
            if do_relu:
                out = jnp.maximum(out, 0.0)
            o_ref[0] = out.astype(o_ref.dtype)

    return kernel


def _make_conv3x3_gn_kernel(num_groups, c_real, stride, ho, wo, t_ho, cin, cp):
    """3x3 conv as 9 shifted in-kernel matmuls + two-pass GroupNorm + ReLU."""
    n_t = ho // t_ho
    n_phase = stride * stride
    rows = t_ho * wo
    count = ho * wo * (c_real // num_groups)

    def kernel(*refs):
        x_refs = refs[:n_phase]
        w_ref, g_ref, b_ref, o_ref, acc_ref, s1_ref, s2_ref = refs[n_phase:]
        t = pl.program_id(1)

        @pl.when(t == 0)
        def _():
            s1_ref[...] = jnp.zeros_like(s1_ref)
            s2_ref[...] = jnp.zeros_like(s2_ref)

        r0 = t * t_ho
        y = jnp.zeros((rows, cp), jnp.float32)
        for kh in range(3):                    # 9 shifted matmuls — no im2col, no 9x HBM traffic
            for kw in range(3):
                dh, ph = kh // stride, kh % stride
                dw, pw = kw // stride, kw % stride
                x = x_refs[ph * stride + pw][0, pl.ds(r0 + dh, t_ho), pl.ds(dw, wo), :]
                y = y + jnp.dot(x.reshape(rows, cin), w_ref[kh * 3 + kw],
                                preferred_element_type=jnp.float32)

        s1_ref[...] += jnp.sum(y, axis=0, keepdims=True)
        s2_ref[...] += jnp.sum(y * y, axis=0, keepdims=True)
        row0 = pl.multiple_of(t * rows, rows)
        acc_ref[pl.ds(row0, rows), :] = y

        @pl.when(t == n_t - 1)
        def _():
            scale, shift = _group_scale_shift(s1_ref[...], s2_ref[...], g_ref[...],
                                              b_ref[...], count, c_real, num_groups)
            out = jnp.maximum(acc_ref[...] * scale + shift, 0.0)
            o_ref[0] = out.astype(o_ref.dtype)

    return kernel


# ------------------------------ kernel wrappers ------------------------------ #
def conv1x1_gn(patches, w_flat, gamma, beta, *, c_real, num_groups=2, do_relu=True,
               residual=None, ds=None, out_dtype=jnp.bfloat16):
    """Fused 1x1-conv(matmul) + GroupNorm + affine (+ fused downsample / residual) (+ ReLU).

    patches:  [N, HW, K] bf16            w_flat: [K, c_real] (cols padded to 128 internally)
    residual: [N, HW, c_real] identity shortcut
    ds:       (patches_ds [N,HW,Kd] bf16, w_ds [Kd,c_real], gamma_ds, beta_ds)
    Returns [N, HW, Cp] (Cp = round_up(c_real, 128); padded channels are exact zeros).
    """
    N, HW, K = patches.shape
    Cp = _round_up(c_real, 128)

    def pad_w(w):
        p = Cp - w.shape[1]
        w = jnp.pad(w, ((0, 0), (0, p))) if p else w
        return w.astype(jnp.bfloat16)

    def pad_v(v):
        v = v.reshape(1, -1).astype(jnp.float32)
        p = Cp - v.shape[1]
        return jnp.pad(v, ((0, 0), (0, p))) if p else v

    t_hw = _pick_tile(HW, max(32, HW // 8), 8)    # >=4-8 grid steps/sample; M>=256 at real sizes
    n_t = HW // t_hw

    args = [patches, pad_w(w_flat), pad_v(gamma), pad_v(beta)]
    in_specs = [
        pl.BlockSpec((1, t_hw, K), lambda n, t: (n, t, 0)),
        pl.BlockSpec((K, Cp), lambda n, t: (0, 0)),
        pl.BlockSpec((1, Cp), lambda n, t: (0, 0)),
        pl.BlockSpec((1, Cp), lambda n, t: (0, 0)),
    ]
    scratch = [pltpu.VMEM((HW, Cp), jnp.float32),     # resident f32 pre-GN accumulator
               pltpu.VMEM((1, Cp), jnp.float32),      # s1
               pltpu.VMEM((1, Cp), jnp.float32)]      # s2
    vmem_bytes = (2 * t_hw * K * 2 + 2 * K * Cp * 2 + 4 * Cp * 4
                  + 2 * HW * Cp * jnp.dtype(out_dtype).itemsize
                  + HW * Cp * 4 + 2 * Cp * 4)

    res_mode = "none"
    if ds is not None:
        res_mode = "conv"
        pds, wds, gds, bds = ds
        Kd = pds.shape[2]
        args += [pds, pad_w(wds), pad_v(gds), pad_v(bds)]
        in_specs += [
            pl.BlockSpec((1, t_hw, Kd), lambda n, t: (n, t, 0)),
            pl.BlockSpec((Kd, Cp), lambda n, t: (0, 0)),
            pl.BlockSpec((1, Cp), lambda n, t: (0, 0)),
            pl.BlockSpec((1, Cp), lambda n, t: (0, 0)),
        ]
        scratch += [pltpu.VMEM((HW, Cp), jnp.float32),
                    pltpu.VMEM((1, Cp), jnp.float32),
                    pltpu.VMEM((1, Cp), jnp.float32)]
        vmem_bytes += (2 * t_hw * Kd * 2 + 2 * Kd * Cp * 2 + 4 * Cp * 4
                       + HW * Cp * 4 + 2 * Cp * 4)
    elif residual is not None:
        res_mode = "data"
        r = residual.astype(jnp.bfloat16)
        pr = Cp - r.shape[2]
        if pr:
            r = jnp.pad(r, ((0, 0), (0, 0), (0, pr)))
        args.append(r)
        in_specs.append(pl.BlockSpec((1, HW, Cp), lambda n, t: (n, 0, 0)))   # resident per sample
        vmem_bytes += 2 * HW * Cp * 2

    kernel = _make_conv1x1_gn_kernel(num_groups, c_real, HW, t_hw, do_relu, res_mode)

    return pl.pallas_call(
        kernel,
        out_shape=jax.ShapeDtypeStruct((N, HW, Cp), out_dtype),
        grid_spec=pltpu.PrefetchScalarGridSpec(
            num_scalar_prefetch=0,
            grid=(N, n_t),
            in_specs=in_specs,
            out_specs=pl.BlockSpec((1, HW, Cp), lambda n, t: (n, 0, 0)),
            scratch_shapes=scratch,
        ),
        compiler_params=pltpu.CompilerParams(
            dimension_semantics=("parallel", "arbitrary"),
            vmem_limit_bytes=_vmem_limit(vmem_bytes)),
    )(*args)


def conv3x3_gn(x_nhwc, w, gamma, beta, *, stride, c_real, num_groups=2, out_dtype=jnp.bfloat16):
    """Fused 3x3 conv (stride s, pad 1) + GroupNorm + affine + ReLU.

    x_nhwc: [N, H, W, C]    w: [Cout, C, 3, 3]
    Returns ([N, Ho*Wo, Cp] bf16 with zero-filled channel padding, (Ho, Wo)).
    """
    N, H, W, C = x_nhwc.shape
    s = stride
    Ho = (H + 2 - 3) // s + 1
    Wo = (W + 2 - 3) // s + 1
    Cp = _round_up(c_real, 128)

    # zero-pad (conv pad=1; padded extents rounded up to a multiple of the stride), then split
    # into s*s stride-1 "phase" tensors (space-to-depth): same total bytes as the activation,
    # and every in-kernel access becomes a contiguous stride-1 slice.
    Hp, Wp = _round_up(H + 2, s), _round_up(W + 2, s)
    xp = jnp.pad(x_nhwc, ((0, 0), (1, Hp - H - 1), (1, Wp - W - 1), (0, 0))).astype(jnp.bfloat16)
    Hq, Wq = Hp // s, Wp // s
    phases = [xp[:, ph::s, pw::s, :] for ph in range(s) for pw in range(s)]

    wq = jnp.transpose(w, (2, 3, 1, 0)).reshape(9, C, c_real)      # [kh*3+kw, Cin, Cout]
    wq = jnp.pad(wq, ((0, 0), (0, 0), (0, Cp - c_real))).astype(jnp.bfloat16)
    gp = jnp.pad(gamma.reshape(1, -1).astype(jnp.float32), ((0, 0), (0, Cp - c_real)))
    bp = jnp.pad(beta.reshape(1, -1).astype(jnp.float32), ((0, 0), (0, Cp - c_real)))

    t_ho = _pick_tile(Ho, max(1, Ho // 4), 1)     # ~4 output-row tiles per sample
    n_t = Ho // t_ho

    in_specs = ([pl.BlockSpec((1, Hq, Wq, C), lambda n, t: (n, 0, 0, 0))] * (s * s)
                + [pl.BlockSpec((9, C, Cp), lambda n, t: (0, 0, 0)),
                   pl.BlockSpec((1, Cp), lambda n, t: (0, 0)),
                   pl.BlockSpec((1, Cp), lambda n, t: (0, 0))])
    vmem_bytes = (2 * s * s * Hq * Wq * C * 2 + 2 * 9 * C * Cp * 2 + 4 * Cp * 4
                  + 2 * Ho * Wo * Cp * jnp.dtype(out_dtype).itemsize
                  + Ho * Wo * Cp * 4 + 2 * Cp * 4)

    kernel = _make_conv3x3_gn_kernel(num_groups, c_real, s, Ho, Wo, t_ho, C, Cp)
    out = pl.pallas_call(
        kernel,
        out_shape=jax.ShapeDtypeStruct((N, Ho * Wo, Cp), out_dtype),
        grid_spec=pltpu.PrefetchScalarGridSpec(
            num_scalar_prefetch=0,
            grid=(N, n_t),
            in_specs=in_specs,
            out_specs=pl.BlockSpec((1, Ho * Wo, Cp), lambda n, t: (n, 0, 0)),
            scratch_shapes=[pltpu.VMEM((Ho * Wo, Cp), jnp.float32),
                            pltpu.VMEM((1, Cp), jnp.float32),
                            pltpu.VMEM((1, Cp), jnp.float32)],
        ),
        compiler_params=pltpu.CompilerParams(
            dimension_semantics=("parallel", "arbitrary"),
            vmem_limit_bytes=_vmem_limit(vmem_bytes)),
    )(*phases, wq, gp, bp)
    return out, (Ho, Wo)


# ------------------------------ JAX glue ------------------------------------ #
def ws_weight(w, rho):
    """Weight standardization exactly as WSConv2d.forward (torch std is unbiased)."""
    wm = jnp.mean(w, axis=(1, 2, 3), keepdims=True)
    w = w - wm
    flat = w.reshape(w.shape[0], -1)
    std = jnp.std(flat, axis=1, ddof=1).reshape(-1, 1, 1, 1) + 1e-5
    return w / std * rho


def flat_w_1x1(w):                                # [Cout, Cin, 1, 1] -> [Cin, Cout]
    return jnp.transpose(w[:, :, 0, 0], (1, 0))


def bottleneck_ws_forward(x_nchw, p, *, stride, rho, no_relu=False):
    N, Cin, H, W = x_nchw.shape
    planes = p["w1"].shape[0]
    expansion = 4
    cout = expansion * planes
    has_ds = (stride != 1) or (Cin != cout)
    bf16 = jnp.bfloat16

    # TODO(synk): keep the network in NHWC between blocks to drop these two transposes.
    x = jnp.transpose(x_nchw, (0, 2, 3, 1))                        # NHWC, f32

    # conv1 (1x1) + gn1 + relu
    p1 = x.reshape(N, H * W, Cin).astype(bf16)
    out1 = conv1x1_gn(p1, flat_w_1x1(ws_weight(p["w1"], rho)), p["g1"], p["b1"],
                      c_real=planes, do_relu=True)
    out1 = out1[:, :, :planes].reshape(N, H, W, planes)            # drop channel padding

    # conv2 (3x3, stride) + gn2 + relu — 9 shifted in-kernel matmuls, no im2col
    out2, (Ho, Wo) = conv3x3_gn(out1, ws_weight(p["w2"], rho), p["g2"], p["b2"],
                                stride=stride, c_real=planes)

    # conv2's output is lane-padded with exact zeros: feed it to conv3 as-is and pad w3's
    # contraction dim with zero rows — K becomes a lane-aligned multiple of 128 for free.
    Kp = out2.shape[2]
    w3 = flat_w_1x1(ws_weight(p["w3"], rho))                       # (planes, 4*planes)
    w3 = jnp.pad(w3, ((0, Kp - planes), (0, 0)))

    # conv3 (1x1) + gn3 + shortcut + final relu — all in one fused kernel
    if has_ds:
        xs = x[:, ::stride, ::stride, :].reshape(N, Ho * Wo, Cin).astype(bf16)
        wds = flat_w_1x1(ws_weight(p["wds"], rho))
        out3 = conv1x1_gn(out2, w3, p["g3"], p["b3"], c_real=cout, do_relu=not no_relu,
                          ds=(xs, wds, p["gds"], p["bds"]))
    else:
        resid = x.reshape(N, H * W, Cin).astype(bf16)              # bf16 residual stream (BW win)
        out3 = conv1x1_gn(out2, w3, p["g3"], p["b3"], c_real=cout, do_relu=not no_relu,
                          residual=resid)
    out3 = out3[:, :, :cout].reshape(N, Ho, Wo, cout)
    return jnp.transpose(out3, (0, 3, 1, 2)).astype(jnp.float32)   # back to NCHW


# --------------------------- pure-JAX reference ----------------------------- #
def _conv_bf16_ref(x, w, stride=1, pad=0):
    # same quantization policy as the kernels: bf16 operands, f32 accumulation
    return jax.lax.conv_general_dilated(
        x.astype(jnp.bfloat16), w.astype(jnp.bfloat16), (stride, stride),
        [(pad, pad), (pad, pad)], dimension_numbers=("NCHW", "OIHW", "NCHW"),
        preferred_element_type=jnp.float32)


def _gn_ref(x, G, gamma, beta):
    N, C, H, W = x.shape
    xg = x.reshape(N, G, (C // G) * H * W)
    m = xg.mean(axis=2, keepdims=True)
    v = xg.var(axis=2, keepdims=True)
    xn = ((xg - m) / jnp.sqrt(v + GN_EPS)).reshape(N, C, H, W)
    return xn * gamma.reshape(1, C, 1, 1) + beta.reshape(1, C, 1, 1)


def ref_forward(x, p, *, stride, rho, no_relu=False):
    planes = p["w1"].shape[0]
    Cin = x.shape[1]
    has_ds = (stride != 1) or (Cin != 4 * planes)
    out = jax.nn.relu(_gn_ref(_conv_bf16_ref(x, ws_weight(p["w1"], rho)), 2, p["g1"], p["b1"]))
    out = jax.nn.relu(_gn_ref(_conv_bf16_ref(out, ws_weight(p["w2"], rho), stride, 1),
                              2, p["g2"], p["b2"]))
    out3 = _gn_ref(_conv_bf16_ref(out, ws_weight(p["w3"], rho)), 2, p["g3"], p["b3"])
    if has_ds:
        short = _gn_ref(_conv_bf16_ref(x, ws_weight(p["wds"], rho), stride), 2, p["gds"], p["bds"])
    else:
        short = x.astype(jnp.bfloat16).astype(jnp.float32)  # mirror the kernel's bf16 residual stream
    out = out3 + short
    return out if no_relu else jax.nn.relu(out)


# ------------------------------- params ------------------------------------- #
def kaiming_uniform(key, shape):
    fan_in = shape[1] * shape[2] * shape[3]
    bound = jnp.sqrt(6.0 / fan_in)                # gain sqrt(2) * sqrt(3/fan_in)
    return jax.random.uniform(key, shape, jnp.float32, -bound, bound)


def init_params(key, in_planes, planes):
    expansion = 4
    k1, k2, k3, k4 = jax.random.split(key, 4)
    return {
        "w1": kaiming_uniform(k1, (planes, in_planes, 1, 1)),
        "g1": jnp.ones((planes,), jnp.float32), "b1": jnp.zeros((planes,), jnp.float32),
        "w2": kaiming_uniform(k2, (planes, planes, 3, 3)),
        "g2": jnp.ones((planes,), jnp.float32), "b2": jnp.zeros((planes,), jnp.float32),
        "w3": kaiming_uniform(k3, (expansion * planes, planes, 1, 1)),
        "g3": jnp.ones((expansion * planes,), jnp.float32),
        "b3": jnp.zeros((expansion * planes,), jnp.float32),
        "wds": kaiming_uniform(k4, (expansion * planes, in_planes, 1, 1)),
        "gds": jnp.ones((expansion * planes,), jnp.float32),
        "bds": jnp.zeros((expansion * planes,), jnp.float32),
    }


if __name__ == "__main__":
    key = jax.random.PRNGKey(0)
    kx1, kp1, kx2, kp2 = jax.random.split(key, 4)
    rho = 0.001

    # config 1: stride-2 bottleneck -> fused downsample-shortcut path (stride-2 3x3 conv)
    N, in_planes, H, W, planes, stride = 2, 16, 16, 16, 8, 2
    x1 = jax.random.normal(kx1, (N, in_planes, H, W), jnp.float32)
    params1 = init_params(kp1, in_planes, planes)
    out1 = jax.block_until_ready(
        bottleneck_ws_forward(x1, params1, stride=stride, rho=rho, no_relu=False))
    ref1 = ref_forward(x1, params1, stride=stride, rho=rho, no_relu=False)
    assert out1.shape == (N, 4 * planes, H // stride, W // stride), out1.shape
    assert jnp.allclose(out1, ref1, atol=1e-2, rtol=2e-2), float(jnp.max(jnp.abs(out1 - ref1)))

    # config 2: stride-1, in_planes == 4*planes -> identity-shortcut path (and no_relu=True)
    x2 = jax.random.normal(kx2, (N, 32, H, W), jnp.float32)
    params2 = init_params(kp2, 32, 8)
    out2 = jax.block_until_ready(
        bottleneck_ws_forward(x2, params2, stride=1, rho=rho, no_relu=True))
    ref2 = ref_forward(x2, params2, stride=1, rho=rho, no_relu=True)
    assert out2.shape == (N, 32, H, W), out2.shape
    assert jnp.allclose(out2, ref2, atol=1e-2, rtol=2e-2), float(jnp.max(jnp.abs(out2 - ref2)))

    print("KERNEL_OK")
</pallas_src>

<mosaic_0001>
module attributes {stable_mosaic.version = 11 : i64} {
  func.func @kernel(%arg0: i32, %arg1: i32, %arg2: memref<1x32x16xbf16, #tpu.memory_space<vmem>>, %arg3: memref<16x128xbf16, #tpu.memory_space<vmem>>, %arg4: memref<1x128xf32, #tpu.memory_space<vmem>>, %arg5: memref<1x128xf32, #tpu.memory_space<vmem>>, %arg6: memref<1x256x128xbf16, #tpu.memory_space<vmem>>, %arg7: memref<256x128xf32, #tpu.memory_space<vmem>>, %arg8: memref<1x128xf32, #tpu.memory_space<vmem>>, %arg9: memref<1x128xf32, #tpu.memory_space<vmem>>) attributes {dimension_semantics = [#tpu.dimension_semantics<parallel>, #tpu.dimension_semantics<arbitrary>], iteration_bounds = array<i64: 2, 8>, scalar_prefetch = 0 : i64, scratch_operands = 3 : i64, tpu.core_type = #tpu.core_type<tc>, window_params = [{transform_indices = @transform_0, window_bounds = array<i64: 1, 32, 16>}, {pipeline_mode = #tpu.pipeline_mode<synchronous>, transform_indices = @transform_1, window_bounds = array<i64: 16, 128>}, {pipeline_mode = #tpu.pipeline_mode<synchronous>, transform_indices = @transform_2, window_bounds = array<i64: 1, 128>}, {pipeline_mode = #tpu.pipeline_mode<synchronous>, transform_indices = @transform_3, window_bounds = array<i64: 1, 128>}, {transform_indices = @transform_4, window_bounds = array<i64: 1, 256, 128>}]} {
    %c0_i32 = arith.constant 0 : i32
    %0 = arith.cmpi eq, %arg1, %c0_i32 : i32
    %1 = arith.extui %0 : i1 to i32
    %c0_i32_0 = arith.constant 0 : i32
    %2 = arith.cmpi ne, %1, %c0_i32_0 : i32
    scf.if %2 {
      %cst_17 = arith.constant 0.000000e+00 : f32
      %25 = vector.broadcast %cst_17 : f32 to vector<1x128xf32>
      %c0_18 = arith.constant 0 : index
      %c0_19 = arith.constant 0 : index
      %26 = vector.load %arg8[%c0_18, %c0_19] : memref<1x128xf32, #tpu.memory_space<vmem>>, vector<1x128xf32>
      tpu.vector_store %arg8[%c0_18, %c0_19], %25 {strides = array<i32>} : memref<1x128xf32, #tpu.memory_space<vmem>>, vector<1x128xf32>,
      %cst_20 = arith.constant 0.000000e+00 : f32
      %27 = vector.broadcast %cst_20 : f32 to vector<1x128xf32>
      %c0_21 = arith.constant 0 : index
      %c0_22 = arith.constant 0 : index
      %28 = vector.load %arg9[%c0_21, %c0_22] : memref<1x128xf32, #tpu.memory_space<vmem>>, vector<1x128xf32>
      tpu.vector_store %arg9[%c0_21, %c0_22], %27 {strides = array<i32>} : memref<1x128xf32, #tpu.memory_space<vmem>>, vector<1x128xf32>,
    } else {
    }
    %c32_i32 = arith.constant 32 : i32
    %3 = arith.muli %arg1, %c32_i32 : i32
    %4 = tpu.assume_multiple %3, 32 : i32
    %c0 = arith.constant 0 : index
    %c0_1 = arith.constant 0 : index
    %c0_2 = arith.constant 0 : index
    %5 = vector.load %arg2[%c0, %c0_1, %c0_2] : memref<1x32x16xbf16, #tpu.memory_space<vmem>>, vector<1x32x16xbf16>
    %6 = vector.shape_cast %5 : vector<1x32x16xbf16> to vector<32x16xbf16>
    %c0_3 = arith.constant 0 : index
    %c0_4 = arith.constant 0 : index
    %7 = vector.load %arg3[%c0_3, %c0_4] : memref<16x128xbf16, #tpu.memory_space<vmem>>, vector<16x128xbf16>
    %cst = arith.constant dense<0.000000e+00> : vector<32x128xf32>
    %8 = tpu.matmul %6, %7, %cst {dimension_numbers = #tpu.dot_dimension_numbers<[1], [0], [0], [1], [0, 0, 1, 1], [], []>} : vector<32x16xbf16>, vector<16x128xbf16>, vector<32x128xf32> -> vector<32x128xf32>
    %c0_5 = arith.constant 0 : index
    %c0_6 = arith.constant 0 : index
    %9 = vector.load %arg8[%c0_5, %c0_6] : memref<1x128xf32, #tpu.memory_space<vmem>>, vector<1x128xf32>
    %cst_7 = arith.constant dense<0.000000e+00> : vector<128xf32>
    %10 = vector.multi_reduction <add>, %8, %cst_7 [0] : vector<32x128xf32> to vector<128xf32>
    %11 = vector.shape_cast %10 : vector<128xf32> to vector<1x128xf32>
    %12 = arith.addf %9, %11 : vector<1x128xf32>
    %c0_8 = arith.constant 0 : index
    %c0_9 = arith.constant 0 : index
    %13 = vector.load %arg8[%c0_8, %c0_9] : memref<1x128xf32, #tpu.memory_space<vmem>>, vector<1x128xf32>
    tpu.vector_store %arg8[%c0_8, %c0_9], %12 {strides = array<i32>} : memref<1x128xf32, #tpu.memory_space<vmem>>, vector<1x128xf32>,
    %c0_10 = arith.constant 0 : index
    %c0_11 = arith.constant 0 : index
    %14 = vector.load %arg9[%c0_10, %c0_11] : memref<1x128xf32, #tpu.memory_space<vmem>>, vector<1x128xf32>
    %15 = arith.mulf %8, %8 : vector<32x128xf32>
    %cst_12 = arith.constant dense<0.000000e+00> : vector<128xf32>
    %16 = vector.multi_reduction <add>, %15, %cst_12 [0] : vector<32x128xf32> to vector<128xf32>
    %17 = vector.shape_cast %16 : vector<128xf32> to vector<1x128xf32>
    %18 = arith.addf %14, %17 : vector<1x128xf32>
    %c0_13 = arith.constant 0 : index
    %c0_14 = arith.constant 0 : index
    %19 = vector.load %arg9[%c0_13, %c0_14] : memref<1x128xf32, #tpu.memory_space<vmem>>, vector<1x128xf32>
    tpu.vector_store %arg9[%c0_13, %c0_14], %18 {strides = array<i32>} : memref<1x128xf32, #tpu.memory_space<vmem>>, vector<1x128xf32>,
    %20 = arith.index_cast %4 : i32 to index
    %c0_15 = arith.constant 0 : index
    %21 = vector.load %arg7[%20, %c0_15] : memref<256x128xf32, #tpu.memory_space<vmem>>, vector<32x128xf32>
    tpu.vector_store %arg7[%20, %c0_15], %8 {strides = array<i32>} : memref<256x128xf32, #tpu.memory_space<vmem>>, vector<32x128xf32>,
    %c7_i32 = arith.constant 7 : i32
    %22 = arith.cmpi eq, %arg1, %c7_i32 : i32
    %23 = arith.extui %22 : i1 to i32
    %c0_i32_16 = arith.constant 0 : i32
    %24 = arith.cmpi ne, %23, %c0_i32_16 : i32
    scf.if %24 {
      %c0_17 = arith.constant 0 : index
      %c0_18 = arith.constant 0 : index
      %25 = vector.load %arg8[%c0_17, %c0_18] : memref<1x128xf32, #tpu.memory_space<vmem>>, vector<1x128xf32>
      %c0_19 = arith.constant 0 : index
      %c0_20 = arith.constant 0 : index
      %26 = vector.load %arg9[%c0_19, %c0_20] : memref<1x128xf32, #tpu.memory_space<vmem>>, vector<1x128xf32>
      %c0_21 = arith.constant 0 : index
      %c0_22 = arith.constant 0 : index
      %27 = vector.load %arg4[%c0_21, %c0_22] : memref<1x128xf32, #tpu.memory_space<vmem>>, vector<1x128xf32>
      %c0_23 = arith.constant 0 : index
      %c0_24 = arith.constant 0 : index
      %28 = vector.load %arg5[%c0_23, %c0_24] : memref<1x128xf32, #tpu.memory_space<vmem>>, vector<1x128xf32>
      %29 = tpu.iota {dimensions = array<i32: 1>} : vector<1x128xi32>
      %cst_25 = arith.constant 0.000000e+00 : f32
      %30 = vector.broadcast %cst_25 : f32 to vector<1x128xf32>
      %cst_26 = arith.constant 0.000000e+00 : f32
      %31 = vector.broadcast %cst_26 : f32 to vector<1x128xf32>
      %c0_i32_27 = arith.constant 0 : i32
      %32 = vector.broadcast %c0_i32_27 : i32 to vector<1x128xi32>
      %33 = arith.cmpi sge, %29, %32 : vector<1x128xi32>
      %c4_i32 = arith.constant 4 : i32
      %34 = vector.broadcast %c4_i32 : i32 to vector<1x128xi32>
      %35 = arith.cmpi slt, %29, %34 : vector<1x128xi32>
      %36 = arith.andi %33, %35 : vector<1x128xi1>
      %cst_28 = arith.constant 0.000000e+00 : f32
      %37 = vector.broadcast %cst_28 : f32 to vector<1x128xf32>
      %38 = arith.select %36, %25, %37 : vector<1x128xi1>, vector<1x128xf32>
      %cst_29 = arith.constant dense<0.000000e+00> : vector<1xf32>
      %39 = vector.multi_reduction <add>, %38, %cst_29 [1] : vector<1x128xf32> to vector<1xf32>
      %40 = vector.shape_cast %39 : vector<1xf32> to vector<1x1xf32>
      %cst_30 = arith.constant 0.000000e+00 : f32
      %41 = vector.broadcast %cst_30 : f32 to vector<1x128xf32>
      %42 = arith.select %36, %26, %41 : vector<1x128xi1>, vector<1x128xf32>
      %cst_31 = arith.constant dense<0.000000e+00> : vector<1xf32>
      %43 = vector.multi_reduction <add>, %42, %cst_31 [1] : vector<1x128xf32> to vector<1xf32>
      %44 = vector.shape_cast %43 : vector<1xf32> to vector<1x1xf32>
      %cst_32 = arith.constant 9.765625E-4 : f32
      %45 = vector.broadcast %cst_32 : f32 to vector<1x1xf32>
      %46 = arith.mulf %40, %45 : vector<1x1xf32>
      %cst_33 = arith.constant 9.765625E-4 : f32
      %47 = vector.broadcast %cst_33 : f32 to vector<1x1xf32>
      %48 = arith.mulf %44, %47 : vector<1x1xf32>
      %49 = arith.mulf %46, %46 : vector<1x1xf32>
      %50 = arith.subf %48, %49 : vector<1x1xf32>
      %cst_34 = arith.constant 0.000000e+00 : f32
      %51 = vector.broadcast %cst_34 : f32 to vector<1x1xf32>
      %52 = arith.maximumf %50, %51 : vector<1x1xf32>
      %cst_35 = arith.constant 9.99999974E-6 : f32
      %53 = vector.broadcast %cst_35 : f32 to vector<1x1xf32>
      %54 = arith.addf %52, %53 : vector<1x1xf32>
      %55 = math.rsqrt %54 : vector<1x1xf32>
      %56 = vector.broadcast %55 : vector<1x1xf32> to vector<1x128xf32>
      %57 = arith.mulf %27, %56 : vector<1x128xf32>
      %58 = arith.select %36, %57, %30 : vector<1x128xi1>, vector<1x128xf32>
      %59 = vector.broadcast %46 : vector<1x1xf32> to vector<1x128xf32>
      %60 = arith.mulf %59, %57 : vector<1x128xf32>
      %61 = arith.subf %28, %60 : vector<1x128xf32>
      %62 = arith.select %36, %61, %31 : vector<1x128xi1>, vector<1x128xf32>
      %c4_i32_36 = arith.constant 4 : i32
      %63 = vector.broadcast %c4_i32_36 : i32 to vector<1x128xi32>
      %64 = arith.cmpi sge, %29, %63 : vector<1x128xi32>
      %c8_i32 = arith.constant 8 : i32
      %65 = vector.broadcast %c8_i32 : i32 to vector<1x128xi32>
      %66 = arith.cmpi slt, %29, %65 : vector<1x128xi32>
      %67 = arith.andi %64, %66 : vector<1x128xi1>
      %cst_37 = arith.constant 0.000000e+00 : f32
      %68 = vector.broadcast %cst_37 : f32 to vector<1x128xf32>
      %69 = arith.select %67, %25, %68 : vector<1x128xi1>, vector<1x128xf32>
      %cst_38 = arith.constant dense<0.000000e+00> : vector<1xf32>
      %70 = vector.multi_reduction <add>, %69, %cst_38 [1] : vector<1x128xf32> to vector<1xf32>
      %71 = vector.shape_cast %70 : vector<1xf32> to vector<1x1xf32>
      %cst_39 = arith.constant 0.000000e+00 : f32
      %72 = vector.broadcast %cst_39 : f32 to vector<1x128xf32>
      %73 = arith.select %67, %26, %72 : vector<1x128xi1>, vector<1x128xf32>
      %cst_40 = arith.constant dense<0.000000e+00> : vector<1xf32>
      %74 = vector.multi_reduction <add>, %73, %cst_40 [1] : vector<1x128xf32> to vector<1xf32>
      %75 = vector.shape_cast %74 : vector<1xf32> to vector<1x1xf32>
      %cst_41 = arith.constant 9.765625E-4 : f32
      %76 = vector.broadcast %cst_41 : f32 to vector<1x1xf32>
      %77 = arith.mulf %71, %76 : vector<1x1xf32>
      %cst_42 = arith.constant 9.765625E-4 : f32
      %78 = vector.broadcast %cst_42 : f32 to vector<1x1xf32>
      %79 = arith.mulf %75, %78 : vector<1x1xf32>
      %80 = arith.mulf %77, %77 : vector<1x1xf32>
      %81 = arith.subf %79, %80 : vector<1x1xf32>
      %cst_43 = arith.constant 0.000000e+00 : f32
      %82 = vector.broadcast %cst_43 : f32 to vector<1x1xf32>
      %83 = arith.maximumf %81, %82 : vector<1x1xf32>
      %cst_44 = arith.constant 9.99999974E-6 : f32
      %84 = vector.broadcast %cst_44 : f32 to vector<1x1xf32>
      %85 = arith.addf %83, %84 : vector<1x1xf32>
      %86 = math.rsqrt %85 : vector<1x1xf32>
      %87 = vector.broadcast %86 : vector<1x1xf32> to vector<1x128xf32>
      %88 = arith.mulf %27, %87 : vector<1x128xf32>
      %89 = arith.select %67, %88, %58 : vector<1x128xi1>, vector<1x128xf32>
      %90 = vector.broadcast %77 : vector<1x1xf32> to vector<1x128xf32>
      %91 = arith.mulf %90, %88 : vector<1x128xf32>
      %92 = arith.subf %28, %91 : vector<1x128xf32>
      %93 = arith.select %67, %92, %62 : vector<1x128xi1>, vector<1x128xf32>
      %c0_45 = arith.constant 0 : index
      %c0_46 = arith.constant 0 : index
      %94 = vector.load %arg7[%c0_45, %c0_46] : memref<256x128xf32, #tpu.memory_space<vmem>>, vector<256x128xf32>
      %95 = vector.broadcast %89 : vector<1x128xf32> to vector<256x128xf32>
      %96 = arith.mulf %94, %95 : vector<256x128xf32>
      %97 = vector.broadcast %93 : vector<1x128xf32> to vector<256x128xf32>
      %98 = arith.addf %96, %97 : vector<256x128xf32>
      %cst_47 = arith.constant 0.000000e+00 : f32
      %99 = vector.broadcast %cst_47 : f32 to vector<256x128xf32>
      %100 = arith.maximumf %98, %99 : vector<256x128xf32>
      %101 = arith.truncf %100 : vector<256x128xf32> to vector<256x128xbf16>
      %c0_48 = arith.constant 0 : index
      %c0_49 = arith.constant 0 : index
      %c0_50 = arith.constant 0 : index
      %102 = vector.load %arg6[%c0_48, %c0_49, %c0_50] : memref<1x256x128xbf16, #tpu.memory_space<vmem>>, vector<1x256x128xbf16>
      %103 = vector.shape_cast %102 : vector<1x256x128xbf16> to vector<256x128xbf16>
      %104 = vector.shape_cast %101 : vector<256x128xbf16> to vector<1x256x128xbf16>
      tpu.vector_store %arg6[%c0_48, %c0_49, %c0_50], %104 {strides = array<i32>} : memref<1x256x128xbf16, #tpu.memory_space<vmem>>, vector<1x256x128xbf16>,
    } else {
    }
    return
  }
  func.func @transform_0(%arg0: i32, %arg1: i32) -> (i32, i32, i32) {
    %c0_i32 = arith.constant 0 : i32
    %c0_i32_0 = arith.constant 0 : i32
    return %arg0, %arg1, %c0_i32 : i32, i32, i32
  }
  func.func @transform_1(%arg0: i32, %arg1: i32) -> (i32, i32) {
    %c0_i32 = arith.constant 0 : i32
    %c0_i32_0 = arith.constant 0 : i32
    %c0_i32_1 = arith.constant 0 : i32
    return %c0_i32, %c0_i32_0 : i32, i32
  }
  func.func @transform_2(%arg0: i32, %arg1: i32) -> (i32, i32) {
    %c0_i32 = arith.constant 0 : i32
    %c0_i32_0 = arith.constant 0 : i32
    %c0_i32_1 = arith.constant 0 : i32
    return %c0_i32, %c0_i32_0 : i32, i32
  }
  func.func @transform_3(%arg0: i32, %arg1: i32) -> (i32, i32) {
    %c0_i32 = arith.constant 0 : i32
    %c0_i32_0 = arith.constant 0 : i32
    %c0_i32_1 = arith.constant 0 : i32
    return %c0_i32, %c0_i32_0 : i32, i32
  }
  func.func @transform_4(%arg0: i32, %arg1: i32) -> (i32, i32, i32) {
    %c0_i32 = arith.constant 0 : i32
    %c0_i32_0 = arith.constant 0 : i32
    %c0_i32_1 = arith.constant 0 : i32
    return %arg0, %c0_i32, %c0_i32_0 : i32, i32, i32
  }
}

</mosaic_0001>

<llo_original>
// kernel: tpu_custom_call.1
$region0: #{tpu_custom_call.1}
  #allocation0 [shape = 'u32[]', space=smem, size = 0x4, offset = 0x4, fixed_abs, tag = 'smem constant byte address 0x4 - core index']
  #allocation1 [shape = 'u32[144,128]{1,0:T(1,128)}', space=vmem, size = 0x12000, scoped, tag = 'internal scratch']
  #allocation2 [shape = 'f32[256,128]{1,0:T(8,128)}', space=vmem, size = 0x20000, scoped, tag = 'scratch operand']
  #allocation3 [shape = 'f32[1,128]{1,0:T(1,128)}', space=vmem, size = 0x200, scoped, tag = 'scratch operand']
  #allocation4 [shape = 'f32[1,128]{1,0:T(1,128)}', space=vmem, size = 0x200, scoped, tag = 'scratch operand']
  %s0 = inlined_call_operand.vmem [shape: bf16[2,256,16], index: 0, kind: input, shape index: {}]
  %s1 = inlined_call_operand.vmem [shape: bf16[16,128], index: 1, kind: input, shape index: {}]
  %s2 = inlined_call_operand.vmem [shape: f32[1,128], index: 2, kind: input, shape index: {}]
  %s3 = inlined_call_operand.vmem [shape: f32[1,128], index: 3, kind: input, shape index: {}]
  %s4 = inlined_call_operand.hbm [shape: bf16[2,256,128], index: 4, kind: output, shape index: {}]
  %s5 = sld [smem:[#allocation0]]
  $region57: #{tpu_custom_call.1} parent=0
    _
  %s7 = ssub.s32 1, %s5
  %s8 = scalar_select 0, %s7, %s5
  $region1: #{tpu_custom_call.1} parent=0
    #allocation5 [shape = 'u8[131072]{0}', space=vmem, size = 0x20000, scoped, tag = 'output window, operand 0']
    #allocation6 [shape = 's32[2]{0}', space=sflag, size = 0x8, scoped, tag = 'scoped memory for tpu_custom_call.1']
    %9 = vsyncpa [#allocation6], 0
    %s10 = scalar_lea.sflag [#allocation6], 1
    %11 = vsyncpa %s10, 0
    loop: start=0, step=1, limit=18
    $region2: #{tpu_custom_call.1} parent=1 // loop_pre_header
      _
    $region3: #{tpu_custom_call.1} parent=1 // loop_header
      %s13 = sphi 0, %s17
      %p14 = scmp.ge.s32.totalorder %s13, 18
      %s20 = sphi 0, %s32
      %s21 = sphi 0, %s28
      %s22 = sphi 0, %s20
      %s23 = sphi 0, %s21
      %s24 = sphi 0, %s22
      %s25 = sphi 0, %s23
      %s37 = sphi 0, %s39
      %s40 = sphi 0, %s37
      %s41 = sphi 0, %s40
      %s57 = sphi 0, %s41
      %s61 = sphi 0, %s61
      %s63 = sphi 0, %s61
      %s64 = sphi 0, %s63
      %s78 = sphi 0, %s64
      %s82 = sphi 0, %s82
      %s84 = sphi 0, %s82
      %s85 = sphi 0, %s84
      %s99 = sphi 0, %s85
      %s103 = sphi 0, %s103
      %s105 = sphi 0, %s103
      %s106 = sphi 0, %s105
      %s120 = sphi 0, %s106
      %s126 = sphi 0, %s128
      %s129 = sphi 0, %s126
      %s130 = sphi 0, %s129
      %s146 = sphi 0, %s130
    $region4: #{tpu_custom_call.1} parent=1 // loop_header_branch
      %16 = sbr.rel (%p14) target = $region8
    $region5: #{tpu_custom_call.1} parent=1 // loop_body
      %s18 = ssub.s32 %s13, 1
      %s19 = ssub.s32 %s13, 2
      %s26 = sadd.s32 1, %s21
      %p27 = scmp.ge.s32.totalorder %s26, 8
      %s28 = scalar_select %p27, 0, %s26
      %s29 = sadd.s32 1, %s20
      %s30 = scalar_select %p27, %s29, %s20
      %p31 = scmp.ge.s32.totalorder %s30, 2
      %s32 = scalar_select %p31, 0, %s30
      %s33 = ssub.s32 %s20, %s32
      %s34 = ssub.s32 %s21, %s28
      %s35 = sor.u32 %s33, %s34
      %p36 = scmp.eq.s32.totalorder %s35, 0
      %s38 = sadd.s32 %s37, 1
      %s39 = scalar_select %p36, %s37, %s38
      %p42 = pneg %p36
      %p43 = scmp.eq.s32.totalorder %s13, 15
      %p44 = por %p42, %p43
      %p45 = scmp.ne.s32.totalorder %s37, %s40
      %p46 = scmp.eq.s32.totalorder %s13, 0
      %p47 = por %p45, %p46
      %p48 = scmp.ne.s32.totalorder %s37, %s40
      %p49 = scmp.eq.s32.totalorder %s18, 15
      %p50 = por %p48, %p49
      %p51 = scmp.ne.s32.totalorder %s40, %s41
      %p52 = scmp.eq.s32.totalorder %s18, 0
      %p53 = por %p51, %p52
      %p54 = scmp.ne.s32.totalorder %s40, %s41
      %p55 = scmp.eq.s32.totalorder %s19, 15
      %p56 = por %p54, %p55
      %p58 = scmp.ne.s32.totalorder %s41, %s57
      %p59 = scmp.eq.s32.totalorder %s19, 0
      %p60 = por %p58, %p59
      %s62 = sadd.s32 %s61, 1
      %p65 = scmp.eq.s32.totalorder %s13, 15
      %p66 = scmp.ne.s32.totalorder %s61, %s63
      %p67 = scmp.eq.s32.totalorder %s13, 0
      %p68 = por %p66, %p67
      %p69 = scmp.ne.s32.totalorder %s61, %s63
      %p70 = scmp.eq.s32.totalorder %s18, 15
      %p71 = por %p69, %p70
      %p72 = scmp.ne.s32.totalorder %s63, %s64
      %p73 = scmp.eq.s32.totalorder %s18, 0
      %p74 = por %p72, %p73
      %p75 = scmp.ne.s32.totalorder %s63, %s64
      %p76 = scmp.eq.s32.totalorder %s19, 15
      %p77 = por %p75, %p76
      %p79 = scmp.ne.s32.totalorder %s64, %s78
      %p80 = scmp.eq.s32.totalorder %s19, 0
      %p81 = por %p79, %p80
      %s83 = sadd.s32 %s82, 1
      %p86 = scmp.eq.s32.totalorder %s13, 15
      %p87 = scmp.ne.s32.totalorder %s82, %s84
      %p88 = scmp.eq.s32.totalorder %s13, 0
      %p89 = por %p87, %p88
      %p90 = scmp.ne.s32.totalorder %s82, %s84
      %p91 = scmp.eq.s32.totalorder %s18, 15
      %p92 = por %p90, %p91
      %p93 = scmp.ne.s32.totalorder %s84, %s85
      %p94 = scmp.eq.s32.totalorder %s18, 0
      %p95 = por %p93, %p94
      %p96 = scmp.ne.s32.totalorder %s84, %s85
      %p97 = scmp.eq.s32.totalorder %s19, 15
      %p98 = por %p96, %p97
      %p100 = scmp.ne.s32.totalorder %s85, %s99
      %p101 = scmp.eq.s32.totalorder %s19, 0
      %p102 = por %p100, %p101
      %s104 = sadd.s32 %s103, 1
      %p107 = scmp.eq.s32.totalorder %s13, 15
      %p108 = scmp.ne.s32.totalorder %s103, %s105
      %p109 = scmp.eq.s32.totalorder %s13, 0
      %p110 = por %p108, %p109
      %p111 = scmp.ne.s32.totalorder %s103, %s105
      %p112 = scmp.eq.s32.totalorder %s18, 15
      %p113 = por %p111, %p112
      %p114 = scmp.ne.s32.totalorder %s105, %s106
      %p115 = scmp.eq.s32.totalorder %s18, 0
      %p116 = por %p114, %p115
      %p117 = scmp.ne.s32.totalorder %s105, %s106
      %p118 = scmp.eq.s32.totalorder %s19, 15
      %p119 = por %p117, %p118
      %p121 = scmp.ne.s32.totalorder %s106, %s120
      %p122 = scmp.eq.s32.totalorder %s19, 0
      %p123 = por %p121, %p122
      %s124 = ssub.s32 %s20, %s32
      %p125 = scmp.eq.s32.totalorder %s124, 0
      %s127 = sadd.s32 %s126, 1
      %s128 = scalar_select %p125, %s126, %s127
      %p131 = pneg %p125
      %p132 = scmp.eq.s32.totalorder %s13, 15
      %p133 = por %p131, %p132
      %p134 = scmp.ne.s32.totalorder %s126, %s129
      %p135 = scmp.eq.s32.totalorder %s13, 0
      %p136 = por %p134, %p135
      %p137 = scmp.ne.s32.totalorder %s126, %s129
      %p138 = scmp.eq.s32.totalorder %s18, 15
      %p139 = por %p137, %p138
      %p140 = scmp.ne.s32.totalorder %s129, %s130
      %p141 = scmp.eq.s32.totalorder %s18, 0
      %p142 = por %p140, %p141
      %p143 = scmp.ne.s32.totalorder %s129, %s130
      %p144 = scmp.eq.s32.totalorder %s19, 15
      %p145 = por %p143, %p144
      %p147 = scmp.ne.s32.totalorder %s130, %s146
      %p148 = scmp.eq.s32.totalorder %s19, 0
      %p149 = por %p147, %p148
      %p150 = scmp.le.s32.totalorder 1, %s13
      %p151 = scmp.lt.s32.totalorder %s13, 17
      %p152 = pnand %p150, %p151
      %p153 = pneg %p152
      // Predicated region
      $region9: #{tpu_custom_call.1} parent=5 // pred_check
        _
      $region10: #{tpu_custom_call.1} parent=5 // pred_check_branch
        %155 = sbr.rel (%p152) target = $region12
      $region11: #{tpu_custom_call.1} parent=5 // pred_region
        %s156 = ssub.s32 %s13, 1
        // Predicated region
        $region13: #{tpu_custom_call.1} parent=11 // pred_check
          %p157 = pneg %p74
        $region14: #{tpu_custom_call.1} parent=11 // pred_check_branch
          %159 = sbr.rel (%p157) target = $region16
        $region15: #{tpu_custom_call.1} parent=11 // pred_region
          _
        $region16: #{tpu_custom_call.1} parent=11 // pred_fallthru
          _
        // Predicated region
        $region17: #{tpu_custom_call.1} parent=11 // pred_check
          %p160 = pneg %p95
        $region18: #{tpu_custom_call.1} parent=11 // pred_check_branch
          %162 = sbr.rel (%p160) target = $region20
        $region19: #{tpu_custom_call.1} parent=11 // pred_region
          _
        $region20: #{tpu_custom_call.1} parent=11 // pred_fallthru
          _
        // Predicated region
        $region21: #{tpu_custom_call.1} parent=11 // pred_check
          %p163 = pneg %p116
        $region22: #{tpu_custom_call.1} parent=11 // pred_check_branch
          %165 = sbr.rel (%p163) target = $region24
        $region23: #{tpu_custom_call.1} parent=11 // pred_region
          _
        $region24: #{tpu_custom_call.1} parent=11 // pred_fallthru
          _
      $region12: #{tpu_custom_call.1} parent=5 // pred_fallthru
        _
      %p166 = scmp.lt.s32.totalorder %s13, 16
      // Predicated region
      $region25: #{tpu_custom_call.1} parent=5 // pred_check
        %p167 = pneg %p166
      $region26: #{tpu_custom_call.1} parent=5 // pred_check_branch
        %169 = sbr.rel (%p167) target = $region28
      $region27: #{tpu_custom_call.1} parent=5 // pred_region
        // Predicated region
        $region29: #{tpu_custom_call.1} parent=27 // pred_check
          %p170 = pneg %p47
        $region30: #{tpu_custom_call.1} parent=27 // pred_check_branch
          %172 = sbr.rel (%p170) target = $region32
        $region31: #{tpu_custom_call.1} parent=27 // pred_region
          %s173 = smul.u32 4, %s21
          %p174 = scmp.lt.s32.totalorder %s20, 1
          %s175 = scalar_select %p174, %s20, 1
          %p176 = scmp.lt.s32.totalorder %s173, 31
          %s177 = scalar_select %p176, %s173, 31
          %s178 = smul.addr %s175, 32
          %s179 = sadd.s32 %s177, %s178
          %s180 = smul.addr %s179, 4
          %s181 = scalar_lea.vmem %s0, %s180
          %s182 = smul.u32 4, %s21
        $region32: #{tpu_custom_call.1} parent=27 // pred_fallthru
          _
      $region28: #{tpu_custom_call.1} parent=5 // pred_fallthru
        _
      %p183 = scmp.le.s32.totalorder 1, %s13
      %p184 = scmp.lt.s32.totalorder %s13, 17
      %p185 = pnand %p183, %p184
      %p186 = pneg %p185
      // Predicated region
      $region33: #{tpu_custom_call.1} parent=5 // pred_check
        _
      $region34: #{tpu_custom_call.1} parent=5 // pred_check_branch
        %188 = sbr.rel (%p185) target = $region36
      $region35: #{tpu_custom_call.1} parent=5 // pred_region
        %s189 = ssub.s32 %s13, 1
        %s190 = smul.u32 4, %s23
        %p191 = scmp.lt.s32.totalorder %s22, 1
        %s192 = scalar_select %p191, %s22, 1
        %p193 = scmp.lt.s32.totalorder %s190, 31
        %s194 = scalar_select %p193, %s190, 31
        %s195 = smul.addr %s192, 32
        %s196 = sadd.s32 %s194, %s195
        %s197 = smul.addr %s196, 4
        %s198 = scalar_lea.vmem %s0, %s197
        %p199 = pneg %p53
        %p200 = pneg %p50
        %p201 = pneg %p74
        %p202 = pneg %p71
        %p203 = pneg %p95
        %p204 = pneg %p92
        %p205 = pneg %p116
        %p206 = pneg %p113
        %p207 = pneg %p142
        %p208 = pneg %p139
        %s209 = sand.u32 %s129, 1
        %s210 = scalar_lea.sflag [#allocation6], %s209
        %s211 = sand.u32 %s129, 1
        %s212 = smul.addr %s211, 128
        %s213 = scalar_lea.vmem [#allocation5], %s212
        %s214 = smul.u32 4, %s23
        %p215 = scmp.lt.s32.totalorder %s22, 1
        %s216 = scalar_select %p215, %s22, 1
        %p217 = scmp.lt.s32.totalorder %s214, 31
        %s218 = scalar_select %p217, %s214, 31
        %s219 = smul.addr %s216, 32
        %s220 = sadd.s32 %s218, %s219
        %s221 = smul.addr %s220, 4
        %s222 = scalar_lea.vmem %s0, %s221
        %s223 = smul.u32 4, %s23
        %p225 = scmp.eq.s32.totalorder %s23, 0
        // Predicated region
        $region37: #{tpu_custom_call.1} parent=35 // pred_check
          %p226 = pneg %p225
        $region38: #{tpu_custom_call.1} parent=35 // pred_check_branch
          %228 = sbr.rel (%p226) target = $region40
        $region39: #{tpu_custom_call.1} parent=35 // pred_region
          %229 = vst [vmem:[#allocation3] sm:$0x1] 0.0
          %230 = vst [vmem:[#allocation4] sm:$0x1] 0.0
        $region40: #{tpu_custom_call.1} parent=35 // pred_fallthru
          _
        %s231 = smul.u32 %s23, 32
        %v232 = vld [vmem:[%s222] sm:$0xf]
        %v233 = vld [vmem:[%s222 + $0x4] sm:$0xf]
        %v234 = vld [vmem:[%s222 + $0x8] sm:$0xf]
        %v235 = vld [vmem:[%s222 + $0xc] sm:$0xf]
        %v236 = vld [vmem:[%s1] sm:$0xf]
        %v237 = vld [vmem:[%s1 + $0x4] sm:$0xf]
        %v242 = vunpack.c.l.b16 %v232
        %v243 = vunpack.c.l.b16 %v233
        %v244 = vunpack.c.l.b16 %v234
        %v245 = vunpack.c.l.b16 %v235
        %v246 = vpack.c.b16 %v243, %v242
        %v247 = vpack.c.b16 %v245, %v244
        %v250 = vunpack.c.l.b16 %v236
        %v251 = vunpack.c.l.b16 %v237
        %v252 = vpack.c.b16 %v251, %v250
        %vm254 = vcmask 130048
        %v256 = vsel %vm254, %v246, 0
        %v259 = vsel %vm254, %v247, 0
        %261 = vmatprep.subr.bf16.mxu0 0
        %262 = vmatpush1.bf16.msra.mxu0 0
        %263 = vmatprep.subr.bf16.mxu0 0
        %264 = vmatpush1.bf16.msra.mxu0 0
        %265 = vmatprep.subr.bf16.mxu0 0
        %266 = vmatpush1.bf16.msra.mxu0 0
        %267 = vmatprep.subr.bf16.mxu0 0
        %268 = vmatpush1.bf16.msra.mxu0 0
        %269 = vmatprep.subr.bf16.mxu0 0
        %270 = vmatpush1.bf16.msra.mxu0 0
        %271 = vmatprep.subr.bf16.mxu0 0
        %272 = vmatpush1.bf16.msra.mxu0 0
        %273 = vmatprep.subr.bf16.mxu0 0
        %274 = vmatpush1.bf16.msra.mxu0 0
        %275 = vmatprep.subr.bf16.mxu0 0
        %276 = vmatpush1.bf16.msra.mxu0 %v252
        %277 = vmatprep.subr.bf16.mxu0 0
        %278 = vmatpush2.bf16.msra.mxu0 0
        %279 = vmatprep.subr.bf16.mxu0 0
        %280 = vmatpush2.bf16.msra.mxu0 0
        %281 = vmatprep.subr.bf16.mxu0 0
        %282 = vmatpush2.bf16.msra.mxu0 0
        %283 = vmatprep.subr.bf16.mxu0 0
        %284 = vmatpush2.bf16.msra.mxu0 0
        %285 = vmatprep.subr.bf16.mxu0 0
        %286 = vmatpush2.bf16.msra.mxu0 0
        %287 = vmatprep.subr.bf16.mxu0 0
        %288 = vmatpush2.bf16.msra.mxu0 0
        %289 = vmatprep.subr.bf16.mxu0 0
        %290 = vmatpush2.bf16.msra.mxu0 0
        %291 = vmatprep.subr.bf16.mxu0 0
        %292 = vmatpush2.bf16.msra.mxu0 0
        %293 = vmatprep.mubr.bf16.mxu0 0
        %294 = vmatmul.mubr.bf16.gmra.mxu0 %v256
        %v295 = vpop.f32.mrf.mxu0
        %v296 = vadd.f32 0.0, %v295
        %v297 = vpop.f32.mrf.mxu0
        %v298 = vpop.f32.mrf.mxu0
        %v299 = vadd.f32 0.0, %v298
        %v300 = vpop.f32.mrf.mxu0
        %301 = vmatprep.mubr.bf16.mxu0 0
        %302 = vmatmul.mubr.bf16.gmra.mxu0 %v259
        %v303 = vpop.f32.mrf.mxu0
        %v304 = vadd.f32 0.0, %v303
        %v305 = vpop.f32.mrf.mxu0
        %v306 = vpop.f32.mrf.mxu0
        %v307 = vadd.f32 0.0, %v306
        %v308 = vpop.f32.mrf.mxu0
        %309 = vdwg.mxu0
        %v310 = vld [vmem:[#allocation3] sm:$0x1]
        %v311 = vadd.f32 %v296, %v299
        %v312 = vadd.f32 %v311, %v304
        %v313 = vadd.f32 %v312, %v307
        %v314 = vrot.slane %v313, 4
        %v315 = vadd.f32 %v313, %v314
        %v316 = vrot.slane %v315, 2
        %v317 = vadd.f32 %v315, %v316
        %v318 = vrot.slane %v317, 1
        %v319 = vadd.f32 %v317, %v318
        %v320 = vadd.f32 %v310, %v319
        %321 = vst [vmem:[#allocation3] sm:$0x1] %v320
        %v322 = vld [vmem:[#allocation4] sm:$0x1]
        %v323 = vmul.f32 %v296, %v296
        %v324 = vmul.f32 %v299, %v299
        %v325 = vmul.f32 %v304, %v304
        %v326 = vmul.f32 %v307, %v307
        %v327 = vadd.f32 %v323, %v324
        %v328 = vadd.f32 %v327, %v325
        %v329 = vadd.f32 %v328, %v326
        %v330 = vrot.slane %v329, 4
        %v331 = vadd.f32 %v329, %v330
        %v332 = vrot.slane %v331, 2
        %v333 = vadd.f32 %v331, %v332
        %v334 = vrot.slane %v333, 1
        %v335 = vadd.f32 %v333, %v334
        %v336 = vadd.f32 %v322, %v335
        %337 = vst [vmem:[#allocation4] sm:$0x1] %v336
        %s338 = scalar_lea.vmem [#allocation2], %s231
        %339 = vst [vmem:[%s338] sm:$0xff] %v296
        %340 = vst [vmem:[%s338 + $0x8] sm:$0xff] %v299
        %341 = vst [vmem:[%s338 + $0x10] sm:$0xff] %v304
        %342 = vst [vmem:[%s338 + $0x18] sm:$0xff] %v307
        %p343 = scmp.eq.s32.totalorder %s23, 7
        // Predicated region
        $region41: #{tpu_custom_call.1} parent=35 // pred_check
          %p344 = pneg %p343
        $region42: #{tpu_custom_call.1} parent=35 // pred_check_branch
          %346 = sbr.rel (%p344) target = $region44
        $region43: #{tpu_custom_call.1} parent=35 // pred_region
          %v347 = vld [vmem:[#allocation3] sm:$0x1]
          %v348 = vld [vmem:[#allocation4] sm:$0x1]
          %v349 = vld [vmem:[%s2] sm:$0x1]
          %v350 = vld [vmem:[%s3] sm:$0x1]
          %v351 = vlaneseq
          %v352 = vand.u32 %v351, 127
          %vm353 = vcmp.ge.s32.totalorder %v352, 0
          %vm354 = vcmp.lt.s32.totalorder %v352, 4
          %vm355 = vmand %vm353, %vm354
          %v356 = vsel %vm355, %v347, 0.0
          %vm357 = vcmask 1040384
          %v358 = vsel %vm357, %v356, 0.0
          %359 = vadd.xlane.f32.xlu0 %v358
          %v360 = vpop.xlane.xlu0 %359
          %v361 = vsel %vm355, %v348, 0.0
          %v362 = vsel %vm357, %v361, 0.0
          %363 = vadd.xlane.f32.xlu0 %v362
          %v364 = vpop.xlane.xlu0 %363
          %v365 = vmul.f32 %v360, 0.0009765625
          %v366 = vmul.f32 %v364, 0.0009765625
          %v367 = vmul.f32 %v365, %v365
          %v368 = vsub.f32 %v366, %v367
          %v369 = vmax.f32 %v368, 0.0
          %v370 = vadd.f32 %v369, 1e-05
          %v371 = vrsqrt.pop %v370
          %v372 = vmul.f32 %v349, %v371
          %v373 = vsel %vm355, %v372, 0.0
          %v374 = vmul.f32 %v365, %v372
          %v375 = vsub.f32 %v350, %v374
          %v376 = vsel %vm355, %v375, 0.0
          %vm377 = vcmp.ge.s32.totalorder %v352, 4
          %vm378 = vcmp.lt.s32.totalorder %v352, 8
          %vm379 = vmand %vm377, %vm378
          %v380 = vsel %vm379, %v347, 0.0
          %v381 = vsel %vm357, %v380, 0.0
          %382 = vadd.xlane.f32.xlu0 %v381
          %v383 = vpop.xlane.xlu0 %382
          %v384 = vsel %vm379, %v348, 0.0
          %v385 = vsel %vm357, %v384, 0.0
          %386 = vadd.xlane.f32.xlu0 %v385
          %v387 = vpop.xlane.xlu0 %386
          %v388 = vmul.f32 %v383, 0.0009765625
          %v389 = vmul.f32 %v387, 0.0009765625
          %v390 = vmul.f32 %v388, %v388
          %v391 = vsub.f32 %v389, %v390
          %v392 = vmax.f32 %v391, 0.0
          %v393 = vadd.f32 %v392, 1e-05
          %v394 = vrsqrt.pop %v393
          %v395 = vmul.f32 %v349, %v394
          %v396 = vsel %vm379, %v395, %v373
          %v397 = vmul.f32 %v388, %v395
          %v398 = vsub.f32 %v350, %v397
          %v399 = vsel %vm379, %v398, %v376
          %v400 = vld [vmem:[#allocation2] sm:$0xff]
          %v401 = vld [vmem:[#allocation2 + $0x8] sm:$0xff]
          %v402 = vld [vmem:[#allocation2 + $0x10] sm:$0xff]
          %v403 = vld [vmem:[#allocation2 + $0x18] sm:$0xff]
          %v404 = vld [vmem:[#allocation2 + $0x20] sm:$0xff]
          %v405 = vld [vmem:[#allocation2 + $0x28] sm:$0xff]
          %v406 = vld [vmem:[#allocation2 + $0x30] sm:$0xff]
          %v407 = vld [vmem:[#allocation2 + $0x38] sm:$0xff]
          %v408 = vld [vmem:[#allocation2 + $0x40] sm:$0xff]
          %v409 = vld [vmem:[#allocation2 + $0x48] sm:$0xff]
          %v410 = vld [vmem:[#allocation2 + $0x50] sm:$0xff]
          %v411 = vld [vmem:[#allocation2 + $0x58] sm:$0xff]
          %v412 = vld [vmem:[#allocation2 + $0x60] sm:$0xff]
          %v413 = vld [vmem:[#allocation2 + $0x68] sm:$0xff]
          %v414 = vld [vmem:[#allocation2 + $0x70] sm:$0xff]
          %v415 = vld [vmem:[#allocation2 + $0x78] sm:$0xff]
          %v416 = vld [vmem:[#allocation2 + $0x80] sm:$0xff]
          %v417 = vld [vmem:[#allocation2 + $0x88] sm:$0xff]
          %v418 = vld [vmem:[#allocation2 + $0x90] sm:$0xff]
          %v419 = vld [vmem:[#allocation2 + $0x98] sm:$0xff]
          %v420 = vld [vmem:[#allocation2 + $0xa0] sm:$0xff]
          %v421 = vld [vmem:[#allocation2 + $0xa8] sm:$0xff]
          %v422 = vld [vmem:[#allocation2 + $0xb0] sm:$0xff]
          %v423 = vld [vmem:[#allocation2 + $0xb8] sm:$0xff]
          %v424 = vld [vmem:[#allocation2 + $0xc0] sm:$0xff]
          %v425 = vld [vmem:[#allocation2 + $0xc8] sm:$0xff]
          %v426 = vld [vmem:[#allocation2 + $0xd0] sm:$0xff]
          %v427 = vld [vmem:[#allocation2 + $0xd8] sm:$0xff]
          %v428 = vld [vmem:[#allocation2 + $0xe0] sm:$0xff]
          %v429 = vld [vmem:[#allocation2 + $0xe8] sm:$0xff]
          %v430 = vld [vmem:[#allocation2 + $0xf0] sm:$0xff]
          %v431 = vld [vmem:[#allocation2 + $0xf8] sm:$0xff]
          %v432 = vlaneseq
          %v433 = vshrl.u32 %v432, 7
          %v434 = vsub.s32 0, %v433
          %v435 = vrot.slane %v396, %v434
          %v436 = vmul.f32 %v400, %v435
          %v437 = vmul.f32 %v401, %v435
          %v438 = vmul.f32 %v402, %v435
          %v439 = vmul.f32 %v403, %v435
          %v440 = vmul.f32 %v404, %v435
          %v441 = vmul.f32 %v405, %v435
          %v442 = vmul.f32 %v406, %v435
          %v443 = vmul.f32 %v407, %v435
          %v444 = vmul.f32 %v408, %v435
          %v445 = vmul.f32 %v409, %v435
          %v446 = vmul.f32 %v410, %v435
          %v447 = vmul.f32 %v411, %v435
          %v448 = vmul.f32 %v412, %v435
          %v449 = vmul.f32 %v413, %v435
          %v450 = vmul.f32 %v414, %v435
          %v451 = vmul.f32 %v415, %v435
          %v452 = vmul.f32 %v416, %v435
          %v453 = vmul.f32 %v417, %v435
          %v454 = vmul.f32 %v418, %v435
          %v455 = vmul.f32 %v419, %v435
          %v456 = vmul.f32 %v420, %v435
          %v457 = vmul.f32 %v421, %v435
          %v458 = vmul.f32 %v422, %v435
          %v459 = vmul.f32 %v423, %v435
          %v460 = vmul.f32 %v424, %v435
          %v461 = vmul.f32 %v425, %v435
          %v462 = vmul.f32 %v426, %v435
          %v463 = vmul.f32 %v427, %v435
          %v464 = vmul.f32 %v428, %v435
          %v465 = vmul.f32 %v429, %v435
          %v466 = vmul.f32 %v430, %v435
          %v467 = vmul.f32 %v431, %v435
          %v468 = vlaneseq
          %v469 = vshrl.u32 %v468, 7
          %v470 = vsub.s32 0, %v469
          %v471 = vrot.slane %v399, %v470
          %v472 = vadd.f32 %v436, %v471
          %v473 = vadd.f32 %v437, %v471
          %v474 = vadd.f32 %v438, %v471
          %v475 = vadd.f32 %v439, %v471
          %v476 = vadd.f32 %v440, %v471
          %v477 = vadd.f32 %v441, %v471
          %v478 = vadd.f32 %v442, %v471
          %v479 = vadd.f32 %v443, %v471
          %v480 = vadd.f32 %v444, %v471
          %v481 = vadd.f32 %v445, %v471
          %v482 = vadd.f32 %v446, %v471
          %v483 = vadd.f32 %v447, %v471
          %v484 = vadd.f32 %v448, %v471
          %v485 = vadd.f32 %v449, %v471
          %v486 = vadd.f32 %v450, %v471
          %v487 = vadd.f32 %v451, %v471
          %v488 = vadd.f32 %v452, %v471
          %v489 = vadd.f32 %v453, %v471
          %v490 = vadd.f32 %v454, %v471
          %v491 = vadd.f32 %v455, %v471
          %v492 = vadd.f32 %v456, %v471
          %v493 = vadd.f32 %v457, %v471
          %v494 = vadd.f32 %v458, %v471
          %v495 = vadd.f32 %v459, %v471
          %v496 = vadd.f32 %v460, %v471
          %v497 = vadd.f32 %v461, %v471
          %v498 = vadd.f32 %v462, %v471
          %v499 = vadd.f32 %v463, %v471
          %v500 = vadd.f32 %v464, %v471
          %v501 = vadd.f32 %v465, %v471
          %v502 = vadd.f32 %v466, %v471
          %v503 = vadd.f32 %v467, %v471
          %v504 = vmax.f32 %v472, 0.0
          %v505 = vmax.f32 %v473, 0.0
          %v506 = vmax.f32 %v474, 0.0
          %v507 = vmax.f32 %v475, 0.0
          %v508 = vmax.f32 %v476, 0.0
          %v509 = vmax.f32 %v477, 0.0
          %v510 = vmax.f32 %v478, 0.0
          %v511 = vmax.f32 %v479, 0.0
          %v512 = vmax.f32 %v480, 0.0
          %v513 = vmax.f32 %v481, 0.0
          %v514 = vmax.f32 %v482, 0.0
          %v515 = vmax.f32 %v483, 0.0
          %v516 = vmax.f32 %v484, 0.0
          %v517 = vmax.f32 %v485, 0.0
          %v518 = vmax.f32 %v486, 0.0
          %v519 = vmax.f32 %v487, 0.0
          %v520 = vmax.f32 %v488, 0.0
          %v521 = vmax.f32 %v489, 0.0
          %v522 = vmax.f32 %v490, 0.0
          %v523 = vmax.f32 %v491, 0.0
          %v524 = vmax.f32 %v492, 0.0
          %v525 = vmax.f32 %v493, 0.0
          %v526 = vmax.f32 %v494, 0.0
          %v527 = vmax.f32 %v495, 0.0
          %v528 = vmax.f32 %v496, 0.0
          %v529 = vmax.f32 %v497, 0.0
          %v530 = vmax.f32 %v498, 0.0
          %v531 = vmax.f32 %v499, 0.0
          %v532 = vmax.f32 %v500, 0.0
          %v533 = vmax.f32 %v501, 0.0
          %v534 = vmax.f32 %v502, 0.0
          %v535 = vmax.f32 %v503, 0.0
          %v536 = vpack.c.bf16 %v505, %v504
          %v537 = vpack.c.bf16 %v507, %v506
          %v538 = vpack.c.bf16 %v509, %v508
          %v539 = vpack.c.bf16 %v511, %v510
          %v540 = vpack.c.bf16 %v513, %v512
          %v541 = vpack.c.bf16 %v515, %v514
          %v542 = vpack.c.bf16 %v517, %v516
          %v543 = vpack.c.bf16 %v519, %v518
          %v544 = vpack.c.bf16 %v521, %v520
          %v545 = vpack.c.bf16 %v523, %v522
          %v546 = vpack.c.bf16 %v525, %v524
          %v547 = vpack.c.bf16 %v527, %v526
          %v548 = vpack.c.bf16 %v529, %v528
          %v549 = vpack.c.bf16 %v531, %v530
          %v550 = vpack.c.bf16 %v533, %v532
          %v551 = vpack.c.bf16 %v535, %v534
          %v568 = vunpack.c.l.b16 %v536
          %v569 = vunpack.c.h.b16 %v536
          %v570 = vunpack.c.l.b16 %v537
          %v571 = vunpack.c.h.b16 %v537
          %v572 = vunpack.c.l.b16 %v538
          %v573 = vunpack.c.h.b16 %v538
          %v574 = vunpack.c.l.b16 %v539
          %v575 = vunpack.c.h.b16 %v539
          %v576 = vunpack.c.l.b16 %v540
          %v577 = vunpack.c.h.b16 %v540
          %v578 = vunpack.c.l.b16 %v541
          %v579 = vunpack.c.h.b16 %v541
          %v580 = vunpack.c.l.b16 %v542
          %v581 = vunpack.c.h.b16 %v542
          %v582 = vunpack.c.l.b16 %v543
          %v583 = vunpack.c.h.b16 %v543
          %v584 = vunpack.c.l.b16 %v544
          %v585 = vunpack.c.h.b16 %v544
          %v586 = vunpack.c.l.b16 %v545
          %v587 = vunpack.c.h.b16 %v545
          %v588 = vunpack.c.l.b16 %v546
          %v589 = vunpack.c.h.b16 %v546
          %v590 = vunpack.c.l.b16 %v547
          %v591 = vunpack.c.h.b16 %v547
          %v592 = vunpack.c.l.b16 %v548
          %v593 = vunpack.c.h.b16 %v548
          %v594 = vunpack.c.l.b16 %v549
          %v595 = vunpack.c.h.b16 %v549
          %v596 = vunpack.c.l.b16 %v550
          %v597 = vunpack.c.h.b16 %v550
          %v598 = vunpack.c.l.b16 %v551
          %v599 = vunpack.c.h.b16 %v551
          %v600 = vpack.c.b16 %v568, %v568
          %v601 = vpack.c.b16 %v569, %v569
          %v602 = vpack.c.b16 %v570, %v570
          %v603 = vpack.c.b16 %v571, %v571
          %v604 = vpack.c.b16 %v572, %v572
          %v605 = vpack.c.b16 %v573, %v573
          %v606 = vpack.c.b16 %v574, %v574
          %v607 = vpack.c.b16 %v575, %v575
          %v608 = vpack.c.b16 %v576, %v576
          %v609 = vpack.c.b16 %v577, %v577
          %v610 = vpack.c.b16 %v578, %v578
          %v611 = vpack.c.b16 %v579, %v579
          %v612 = vpack.c.b16 %v580, %v580
          %v613 = vpack.c.b16 %v581, %v581
          %v614 = vpack.c.b16 %v582, %v582
          %v615 = vpack.c.b16 %v583, %v583
          %v616 = vpack.c.b16 %v584, %v584
          %v617 = vpack.c.b16 %v585, %v585
          %v618 = vpack.c.b16 %v586, %v586
          %v619 = vpack.c.b16 %v587, %v587
          %v620 = vpack.c.b16 %v588, %v588
          %v621 = vpack.c.b16 %v589, %v589
          %v622 = vpack.c.b16 %v590, %v590
          %v623 = vpack.c.b16 %v591, %v591
          %v624 = vpack.c.b16 %v592, %v592
          %v625 = vpack.c.b16 %v593, %v593
          %v626 = vpack.c.b16 %v594, %v594
          %v627 = vpack.c.b16 %v595, %v595
          %v628 = vpack.c.b16 %v596, %v596
          %v629 = vpack.c.b16 %v597, %v597
          %v630 = vpack.c.b16 %v598, %v598
          %v631 = vpack.c.b16 %v599, %v599
          %664 = vst [vmem:[%s213] sm:$0xf] %v600
          %665 = vst [vmem:[%s213 + $0x4] sm:$0xf] %v601
          %666 = vst [vmem:[%s213 + $0x8] sm:$0xf] %v602
          %667 = vst [vmem:[%s213 + $0xc] sm:$0xf] %v603
          %668 = vst [vmem:[%s213 + $0x10] sm:$0xf] %v604
          %669 = vst [vmem:[%s213 + $0x14] sm:$0xf] %v605
          %670 = vst [vmem:[%s213 + $0x18] sm:$0xf] %v606
          %671 = vst [vmem:[%s213 + $0x1c] sm:$0xf] %v607
          %672 = vst [vmem:[%s213 + $0x20] sm:$0xf] %v608
          %673 = vst [vmem:[%s213 + $0x24] sm:$0xf] %v609
          %674 = vst [vmem:[%s213 + $0x28] sm:$0xf] %v610
          %675 = vst [vmem:[%s213 + $0x2c] sm:$0xf] %v611
          %676 = vst [vmem:[%s213 + $0x30] sm:$0xf] %v612
          %677 = vst [vmem:[%s213 + $0x34] sm:$0xf] %v613
          %678 = vst [vmem:[%s213 + $0x38] sm:$0xf] %v614
          %679 = vst [vmem:[%s213 + $0x3c] sm:$0xf] %v615
          %680 = vst [vmem:[%s213 + $0x40] sm:$0xf] %v616
          %681 = vst [vmem:[%s213 + $0x44] sm:$0xf] %v617
          %682 = vst [vmem:[%s213 + $0x48] sm:$0xf] %v618
          %683 = vst [vmem:[%s213 + $0x4c] sm:$0xf] %v619
          %684 = vst [vmem:[%s213 + $0x50] sm:$0xf] %v620
          %685 = vst [vmem:[%s213 + $0x54] sm:$0xf] %v621
          %686 = vst [vmem:[%s213 + $0x58] sm:$0xf] %v622
          %687 = vst [vmem:[%s213 + $0x5c] sm:$0xf] %v623
          %688 = vst [vmem:[%s213 + $0x60] sm:$0xf] %v624
          %689 = vst [vmem:[%s213 + $0x64] sm:$0xf] %v625
          %690 = vst [vmem:[%s213 + $0x68] sm:$0xf] %v626
          %691 = vst [vmem:[%s213 + $0x6c] sm:$0xf] %v627
          %692 = vst [vmem:[%s213 + $0x70] sm:$0xf] %v628
          %693 = vst [vmem:[%s213 + $0x74] sm:$0xf] %v629
          %694 = vst [vmem:[%s213 + $0x78] sm:$0xf] %v630
          %695 = vst [vmem:[%s213 + $0x7c] sm:$0xf] %v631
        $region44: #{tpu_custom_call.1} parent=35 // pred_fallthru
          _
        %s696 = sand.u32 %s129, 1
        %s697 = scalar_lea.sflag [#allocation6], %s696
        %s698 = sand.u32 %s129, 1
        %s699 = smul.addr %s698, 128
        %s700 = scalar_lea.vmem [#allocation5], %s699
        // Predicated region
        $region45: #{tpu_custom_call.1} parent=35 // pred_check
          %p701 = pneg %p139
        $region46: #{tpu_custom_call.1} parent=35 // pred_check_branch
          %703 = sbr.rel (%p701) target = $region48
        $region47: #{tpu_custom_call.1} parent=35 // pred_region
          %s705 = ssub.s32 2048, 2048
          %706 = vsyncadd %s697, %s705
          %s707 = smul.addr %s22, 32
          %s708 = smul.addr %s707, 64
          %s709 = scalar_lea.hbm %s4, %s708
          %s710 = sshll.u32 %s700, 4
          %s711 = int_to_ptr.vmem [resolvable:$true] %s710
          %716 = dma.vmem_to_hbm [thread:$0]  %s711, 2048, %s709, %s697, 64, 64, 4
        $region48: #{tpu_custom_call.1} parent=35 // pred_fallthru
          _
      $region36: #{tpu_custom_call.1} parent=5 // pred_fallthru
        _
      %p717 = scmp.le.s32.totalorder 2, %s13
      // Predicated region
      $region49: #{tpu_custom_call.1} parent=5 // pred_check
        %p718 = pneg %p717
      $region50: #{tpu_custom_call.1} parent=5 // pred_check_branch
        %720 = sbr.rel (%p718) target = $region52
      $region51: #{tpu_custom_call.1} parent=5 // pred_region
        %s721 = ssub.s32 %s13, 2
        // Predicated region
        $region53: #{tpu_custom_call.1} parent=51 // pred_check
          %p722 = pneg %p145
        $region54: #{tpu_custom_call.1} parent=51 // pred_check_branch
          %724 = sbr.rel (%p722) target = $region56
        $region55: #{tpu_custom_call.1} parent=51 // pred_region
          %s725 = sand.u32 %s130, 1
          %s726 = scalar_lea.sflag [#allocation6], %s725
          %s727 = sand.u32 %s130, 1
          %s728 = smul.addr %s727, 128
          %s729 = scalar_lea.vmem [#allocation5], %s728
          %730 = dma.done %s726, 2048
        $region56: #{tpu_custom_call.1} parent=51 // pred_fallthru
          _
      $region52: #{tpu_custom_call.1} parent=5 // pred_fallthru
        _
    $region6: #{tpu_custom_call.1} parent=1 // loop_footer
      %s17 = sadd.s32 1, %s13
    $region7: #{tpu_custom_call.1} parent=1 // loop_footer_branch
      %12 = sbr.rel target = $region3
    $region8: #{tpu_custom_call.1} parent=1 // loop_exit
      _
    %731 = vsyncpa [#allocation6], 1
    %s732 = scalar_lea.sflag [#allocation6], 1
    %733 = vsyncpa %s732, 1

</llo_original>
